<compile_context>
chip_gen: v7x
topology: tpu7x:2x2x1
jax: 0.10.0
libtpu: 0.0.40
codegen_flags: <defaults>
</compile_context>

<pallas_src>
import jax
import jax.numpy as jnp
from jax.experimental import pallas as pl
from jax.experimental.pallas import tpu as pltpu


def _round_up(n, m):
    return ((n + m - 1) // m) * m


# --------------------------------------------------------------------------- kernel
def mln_kernel(x_ref, c_ref, rw_ref, rb_ref, gbw_ref, gbb_ref, o_ref):
    f_dim = x_ref.shape[-1]

    # ---- LayerNorm(x) (no affine, eps=1e-5), f32 on the VPU ----
    x = x_ref[...].astype(jnp.float32)
    mu = jnp.mean(x, axis=-1, keepdims=True)
    xc = x - mu
    var = jnp.mean(xc * xc, axis=-1, keepdims=True)
    xn = xc * jax.lax.rsqrt(var + 1e-5)

    # ---- reduce: Linear(c_dim -> f_dim) + ReLU (bf16 MXU operands, f32 acc) ----
    h = jnp.dot(c_ref[...].astype(jnp.bfloat16), rw_ref[...],
                preferred_element_type=jnp.float32) + rb_ref[...]
    h = jnp.maximum(h, 0.0)

    # ---- fused gamma|beta projection: one (tm, 2*f_dim) matmul ----
    gb = jnp.dot(h.astype(jnp.bfloat16), gbw_ref[...],
                 preferred_element_type=jnp.float32) + gbb_ref[...]
    gamma = gb[:, :f_dim]
    beta = gb[:, f_dim:]

    # ---- modulate ----
    o_ref[...] = (gamma * xn + beta).astype(o_ref.dtype)


# ----------------------------------------------------------------- one-time param prep
def prepare_mln_params(params):
    """One-time fusion/cast of MLN parameters (hoisted out of the forward path).

    params = (rw, rb, gw, gb, bw, bb) with weights stored (in_features, out_features).
    Returns (rw_bf16, rb_f32[1,f], gamma|beta_weight_bf16[f,2f], gamma|beta_bias_f32[1,2f]).
    """
    rw, rb, gw, gb_, bw, bb = params
    f_dim = rw.shape[1]
    rw_b = rw.astype(jnp.bfloat16)                                   # (c_dim, f_dim)
    gbw = jnp.concatenate([gw, bw], axis=1).astype(jnp.bfloat16)     # (f_dim, 2*f_dim)
    rb2 = rb.reshape(1, f_dim).astype(jnp.float32)
    gbb = jnp.concatenate([gb_, bb]).reshape(1, 2 * f_dim).astype(jnp.float32)
    return rw_b, rb2, gbw, gbb


# ------------------------------------------------------------------------ helpers
def _default_vmem_budget_bytes():
    # Generation-aware budget: ~96-104 MiB on 128 MiB parts (v5e/v6e), ~40 MiB on
    # v7x's 64 MiB per-TC VMEM.  Falls back to a conservative 40 MiB if the query fails.
    try:
        cap = pltpu.get_tpu_info().vmem_capacity_bytes
    except Exception:  # pragma: no cover - defensive
        cap = 64 << 20
    return max(int(cap * 0.625), cap - (32 << 20))


def _weight_spec(shape):
    """Grid-invariant weight/bias block: constant index_map, single-buffered."""
    try:
        return pl.BlockSpec(shape, lambda i: (0, 0), pipeline_mode=pl.Buffered(1))
    except TypeError:  # older BlockSpec signature without pipeline_mode
        return pl.BlockSpec(shape, lambda i: (0, 0))


# ------------------------------------------------------------------------- forward
def mln_forward(x, c, prepped_params, *, tm=512, vmem_budget_bytes=None):
    """x: [..., f_dim], c: [..., c_dim]. Returns same shape/dtype as x."""
    f_dim = x.shape[-1]
    c_dim = c.shape[-1]
    assert f_dim % 128 == 0, "f_dim must be a multiple of 128"
    # TODO(synk): pad f_dim to a multiple of 128 in the wrapper for the general case.

    rw_b, rb2, gbw, gbb = prepped_params

    lead_shape = x.shape[:-1]
    N = 1
    for s in lead_shape:
        N *= s
    x2 = x.reshape(N, f_dim)      # row-major reshape: no HBM copy
    c2 = c.reshape(N, c_dim)

    if vmem_budget_bytes is None:
        vmem_budget_bytes = _default_vmem_budget_bytes()

    x_bytes = jnp.dtype(x.dtype).itemsize
    c_bytes = jnp.dtype(c.dtype).itemsize

    def vmem_bytes(t):
        # double-buffered row blocks (x, c, out); c tile lane-padded to >=128 in VMEM
        io = 2 * t * (f_dim * x_bytes + max(c_dim, 128) * c_bytes + f_dim * x_bytes)
        # single-buffered weights/biases
        w = max(c_dim, 128) * f_dim * 2 + f_dim * 2 * f_dim * 2 + 3 * f_dim * 4
        # in-kernel f32 intermediates: x upcast, xc, xn, h, gb(2*f) + LN stats
        tmp = 6 * t * f_dim * 4 + 2 * t * 128 * 4
        return io + w + tmp

    # ---- tile sizing: as big as fits the budget, multiples of 128 for full MXU passes
    tm_cap = _round_up(tm, 128)
    while tm_cap > 128 and vmem_bytes(tm_cap) > vmem_budget_bytes:
        tm_cap = _round_up(tm_cap // 2, 128)
    while tm_cap > 16 and vmem_bytes(tm_cap) > vmem_budget_bytes:
        tm_cap = _round_up(tm_cap // 2, 16)

    if N <= tm_cap:
        if N >= 256:
            # split into >=2 grid steps so v7x's two TensorCores both get work
            tm_eff = min(tm_cap, _round_up((N + 1) // 2, 128))
        else:
            tm_eff = N            # single block == full array (no divisibility issue)
    else:
        tm_eff = tm_cap

    grid = (pl.cdiv(N, tm_eff),)  # ragged last block: OOB reads garbage, writes masked

    cost = pl.CostEstimate(
        flops=2 * N * f_dim * (c_dim + 2 * f_dim) + 10 * N * f_dim,
        transcendentals=N,
        bytes_accessed=(2 * N * f_dim + N * c_dim) * x_bytes
        + rw_b.size * 2 + gbw.size * 2 + (rb2.size + gbb.size) * 4,
    )

    out = pl.pallas_call(
        mln_kernel,
        out_shape=jax.ShapeDtypeStruct((N, f_dim), x.dtype),
        grid_spec=pltpu.PrefetchScalarGridSpec(
            num_scalar_prefetch=0,
            grid=grid,
            in_specs=[
                pl.BlockSpec((tm_eff, f_dim), lambda i: (i, 0)),   # x rows
                pl.BlockSpec((tm_eff, c_dim), lambda i: (i, 0)),   # c rows
                _weight_spec((c_dim, f_dim)),          # reduce weight (bf16)
                _weight_spec((1, f_dim)),              # reduce bias (f32)
                _weight_spec((f_dim, 2 * f_dim)),      # fused gamma|beta weight (bf16)
                _weight_spec((1, 2 * f_dim)),          # fused gamma|beta bias (f32)
            ],
            out_specs=pl.BlockSpec((tm_eff, f_dim), lambda i: (i, 0)),
        ),
        compiler_params=pltpu.CompilerParams(
            dimension_semantics=("parallel",),
            vmem_limit_bytes=vmem_budget_bytes,
        ),
        cost_estimate=cost,
    )(x2, c2, rw_b, rb2, gbw, gbb)

    return out.reshape(*lead_shape, f_dim)


# ----------------------------------------------------------------------- reference
def init_mln_params(key, c_dim, f_dim):
    """Matches MLN.__init__/init_weight:
       - reduce Linear: default (uniform) init
       - gamma: weight=0, bias=1
       - beta:  weight=0, bias=0
    Weights stored as (in, out)."""
    k1, k2 = jax.random.split(key)
    bound = 1.0 / (c_dim ** 0.5)
    rw = jax.random.uniform(k1, (c_dim, f_dim), jnp.float32, -bound, bound)
    rb = jax.random.uniform(k2, (f_dim,), jnp.float32, -bound, bound)
    gw = jnp.zeros((f_dim, f_dim), jnp.float32)
    gb = jnp.ones((f_dim,), jnp.float32)
    bw = jnp.zeros((f_dim, f_dim), jnp.float32)
    bb = jnp.zeros((f_dim,), jnp.float32)
    return (rw, rb, gw, gb, bw, bb)


def mln_reference(x, c, params):
    rw, rb, gw, gb, bw, bb = params
    mu = jnp.mean(x, axis=-1, keepdims=True)
    var = jnp.mean((x - mu) ** 2, axis=-1, keepdims=True)
    xn = (x - mu) * jax.lax.rsqrt(var + 1e-5)
    h = jnp.maximum(c @ rw + rb, 0.0)
    gamma = h @ gw + gb
    beta = h @ bw + bb
    return gamma * xn + beta


if __name__ == "__main__":
    key = jax.random.PRNGKey(0)
    kx, kc, kp, kx2, kc2, kg, kb = jax.random.split(key, 7)

    # ---- Test 1: module-spec init (gamma/beta weights zero), tight tolerance ----
    batch, seq = 2, 8
    c_dim, f_dim = 32, 128
    x = jax.random.normal(kx, (batch, seq, f_dim), jnp.float32)
    c = jax.random.normal(kc, (batch, seq, c_dim), jnp.float32)
    params = init_mln_params(kp, c_dim, f_dim)
    prepped = jax.tree_util.tree_map(jax.block_until_ready, prepare_mln_params(params))

    out = jax.block_until_ready(mln_forward(x, c, prepped))
    ref = mln_reference(x, c, params)
    assert out.shape == x.shape
    assert jnp.allclose(out, ref, atol=1e-4, rtol=1e-4), "mismatch vs reference (default init)"

    # ---- Test 2: random gamma/beta weights + ragged N (partial last block, 2-step grid),
    #              looser tolerance for bf16 MXU operands ----
    batch2, seq2 = 3, 50                       # N = 150 (not a multiple of the tile)
    x_r = jax.random.normal(kx2, (batch2, seq2, f_dim), jnp.float32)
    c_r = jax.random.normal(kc2, (batch2, seq2, c_dim), jnp.float32)
    fb = 1.0 / (f_dim ** 0.5)
    rw, rb, _, _, _, _ = params
    params_r = (
        rw, rb,
        jax.random.uniform(kg, (f_dim, f_dim), jnp.float32, -fb, fb),
        jnp.ones((f_dim,), jnp.float32),
        jax.random.uniform(kb, (f_dim, f_dim), jnp.float32, -fb, fb),
        jnp.zeros((f_dim,), jnp.float32),
    )
    prepped_r = prepare_mln_params(params_r)
    out_r = jax.block_until_ready(mln_forward(x_r, c_r, prepped_r, tm=128))
    ref_r = mln_reference(x_r, c_r, params_r)
    assert out_r.shape == x_r.shape
    assert jnp.allclose(out_r, ref_r, atol=3e-2, rtol=3e-2), "mismatch vs reference (random params)"

    print("KERNEL_OK")
</pallas_src>

<mosaic_0001>
module attributes {stable_mosaic.version = 11 : i64} {
  func.func @mln_kernel(%arg0: i32, %arg1: memref<16x128xf32, #tpu.memory_space<vmem>>, %arg2: memref<16x32xf32, #tpu.memory_space<vmem>>, %arg3: memref<32x128xbf16, #tpu.memory_space<vmem>>, %arg4: memref<1x128xf32, #tpu.memory_space<vmem>>, %arg5: memref<128x256xbf16, #tpu.memory_space<vmem>>, %arg6: memref<1x256xf32, #tpu.memory_space<vmem>>, %arg7: memref<16x128xf32, #tpu.memory_space<vmem>>) attributes {dimension_semantics = [#tpu.dimension_semantics<parallel>], iteration_bounds = array<i64: 1>, scalar_prefetch = 0 : i64, scratch_operands = 0 : i64, tpu.core_type = #tpu.core_type<tc>, window_params = [{transform_indices = @transform_0, window_bounds = array<i64: 16, 128>}, {transform_indices = @transform_1, window_bounds = array<i64: 16, 32>}, {pipeline_mode = #tpu.pipeline_mode<synchronous>, transform_indices = @transform_2, window_bounds = array<i64: 32, 128>}, {pipeline_mode = #tpu.pipeline_mode<synchronous>, transform_indices = @transform_3, window_bounds = array<i64: 1, 128>}, {pipeline_mode = #tpu.pipeline_mode<synchronous>, transform_indices = @transform_4, window_bounds = array<i64: 128, 256>}, {pipeline_mode = #tpu.pipeline_mode<synchronous>, transform_indices = @transform_5, window_bounds = array<i64: 1, 256>}, {transform_indices = @transform_6, window_bounds = array<i64: 16, 128>}]} {
    %c0 = arith.constant 0 : index
    %c0_0 = arith.constant 0 : index
    %0 = vector.load %arg1[%c0, %c0_0] : memref<16x128xf32, #tpu.memory_space<vmem>>, vector<16x128xf32>
    %cst = arith.constant dense<0.000000e+00> : vector<16xf32>
    %1 = vector.multi_reduction <add>, %0, %cst [1] : vector<16x128xf32> to vector<16xf32>
    %2 = vector.shape_cast %1 : vector<16xf32> to vector<16x1xf32>
    %cst_1 = arith.constant 1.280000e+02 : f32
    %3 = vector.broadcast %cst_1 : f32 to vector<16x1xf32>
    %4 = arith.divf %2, %3 : vector<16x1xf32>
    %5 = vector.broadcast %4 : vector<16x1xf32> to vector<16x128xf32>
    %6 = arith.subf %0, %5 : vector<16x128xf32>
    %7 = arith.mulf %6, %6 : vector<16x128xf32>
    %cst_2 = arith.constant dense<0.000000e+00> : vector<16xf32>
    %8 = vector.multi_reduction <add>, %7, %cst_2 [1] : vector<16x128xf32> to vector<16xf32>
    %9 = vector.shape_cast %8 : vector<16xf32> to vector<16x1xf32>
    %cst_3 = arith.constant 1.280000e+02 : f32
    %10 = vector.broadcast %cst_3 : f32 to vector<16x1xf32>
    %11 = arith.divf %9, %10 : vector<16x1xf32>
    %cst_4 = arith.constant 9.99999974E-6 : f32
    %12 = vector.broadcast %cst_4 : f32 to vector<16x1xf32>
    %13 = arith.addf %11, %12 : vector<16x1xf32>
    %14 = math.rsqrt %13 : vector<16x1xf32>
    %15 = vector.broadcast %14 : vector<16x1xf32> to vector<16x128xf32>
    %16 = arith.mulf %6, %15 : vector<16x128xf32>
    %c0_5 = arith.constant 0 : index
    %c0_6 = arith.constant 0 : index
    %17 = vector.load %arg2[%c0_5, %c0_6] : memref<16x32xf32, #tpu.memory_space<vmem>>, vector<16x32xf32>
    %18 = arith.truncf %17 : vector<16x32xf32> to vector<16x32xbf16>
    %c0_7 = arith.constant 0 : index
    %c0_8 = arith.constant 0 : index
    %19 = vector.load %arg3[%c0_7, %c0_8] : memref<32x128xbf16, #tpu.memory_space<vmem>>, vector<32x128xbf16>
    %cst_9 = arith.constant dense<0.000000e+00> : vector<16x128xf32>
    %20 = tpu.matmul %18, %19, %cst_9 {dimension_numbers = #tpu.dot_dimension_numbers<[1], [0], [0], [1], [0, 0, 1, 1], [], []>} : vector<16x32xbf16>, vector<32x128xbf16>, vector<16x128xf32> -> vector<16x128xf32>
    %c0_10 = arith.constant 0 : index
    %c0_11 = arith.constant 0 : index
    %21 = vector.load %arg4[%c0_10, %c0_11] : memref<1x128xf32, #tpu.memory_space<vmem>>, vector<1x128xf32>
    %22 = vector.broadcast %21 : vector<1x128xf32> to vector<16x128xf32>
    %23 = arith.addf %20, %22 : vector<16x128xf32>
    %cst_12 = arith.constant 0.000000e+00 : f32
    %24 = vector.broadcast %cst_12 : f32 to vector<16x128xf32>
    %25 = arith.maximumf %23, %24 : vector<16x128xf32>
    %26 = arith.truncf %25 : vector<16x128xf32> to vector<16x128xbf16>
    %c0_13 = arith.constant 0 : index
    %c0_14 = arith.constant 0 : index
    %27 = vector.load %arg5[%c0_13, %c0_14] : memref<128x256xbf16, #tpu.memory_space<vmem>>, vector<128x256xbf16>
    %cst_15 = arith.constant dense<0.000000e+00> : vector<16x256xf32>
    %28 = tpu.matmul %26, %27, %cst_15 {dimension_numbers = #tpu.dot_dimension_numbers<[1], [0], [0], [1], [0, 0, 1, 1], [], []>} : vector<16x128xbf16>, vector<128x256xbf16>, vector<16x256xf32> -> vector<16x256xf32>
    %c0_16 = arith.constant 0 : index
    %c0_17 = arith.constant 0 : index
    %29 = vector.load %arg6[%c0_16, %c0_17] : memref<1x256xf32, #tpu.memory_space<vmem>>, vector<1x256xf32>
    %30 = vector.broadcast %29 : vector<1x256xf32> to vector<16x256xf32>
    %31 = arith.addf %28, %30 : vector<16x256xf32>
    %32 = vector.extract_strided_slice %31 {offsets = [0, 0], sizes = [16, 128], strides = [1, 1]} : vector<16x256xf32> to vector<16x128xf32>
    %33 = vector.extract_strided_slice %31 {offsets = [0, 128], sizes = [16, 128], strides = [1, 1]} : vector<16x256xf32> to vector<16x128xf32>
    %34 = arith.mulf %32, %16 : vector<16x128xf32>
    %35 = arith.addf %34, %33 : vector<16x128xf32>
    %c0_18 = arith.constant 0 : index
    %c0_19 = arith.constant 0 : index
    %36 = vector.load %arg7[%c0_18, %c0_19] : memref<16x128xf32, #tpu.memory_space<vmem>>, vector<16x128xf32>
    tpu.vector_store %arg7[%c0_18, %c0_19], %35 {strides = array<i32>} : memref<16x128xf32, #tpu.memory_space<vmem>>, vector<16x128xf32>,
    return
  }
  func.func @transform_0(%arg0: i32) -> (i32, i32) {
    %c0_i32 = arith.constant 0 : i32
    %c0_i32_0 = arith.constant 0 : i32
    return %arg0, %c0_i32 : i32, i32
  }
  func.func @transform_1(%arg0: i32) -> (i32, i32) {
    %c0_i32 = arith.constant 0 : i32
    %c0_i32_0 = arith.constant 0 : i32
    return %arg0, %c0_i32 : i32, i32
  }
  func.func @transform_2(%arg0: i32) -> (i32, i32) {
    %c0_i32 = arith.constant 0 : i32
    %c0_i32_0 = arith.constant 0 : i32
    %c0_i32_1 = arith.constant 0 : i32
    return %c0_i32, %c0_i32_0 : i32, i32
  }
  func.func @transform_3(%arg0: i32) -> (i32, i32) {
    %c0_i32 = arith.constant 0 : i32
    %c0_i32_0 = arith.constant 0 : i32
    %c0_i32_1 = arith.constant 0 : i32
    return %c0_i32, %c0_i32_0 : i32, i32
  }
  func.func @transform_4(%arg0: i32) -> (i32, i32) {
    %c0_i32 = arith.constant 0 : i32
    %c0_i32_0 = arith.constant 0 : i32
    %c0_i32_1 = arith.constant 0 : i32
    return %c0_i32, %c0_i32_0 : i32, i32
  }
  func.func @transform_5(%arg0: i32) -> (i32, i32) {
    %c0_i32 = arith.constant 0 : i32
    %c0_i32_0 = arith.constant 0 : i32
    %c0_i32_1 = arith.constant 0 : i32
    return %c0_i32, %c0_i32_0 : i32, i32
  }
  func.func @transform_6(%arg0: i32) -> (i32, i32) {
    %c0_i32 = arith.constant 0 : i32
    %c0_i32_0 = arith.constant 0 : i32
    return %arg0, %c0_i32 : i32, i32
  }
}

</mosaic_0001>

<llo_original>
// kernel: tpu_custom_call.1
$region0: #{tpu_custom_call.1}
  #allocation0 [shape = 'u32[]', space=smem, size = 0x4, offset = 0x4, fixed_abs, tag = 'smem constant byte address 0x4 - core index']
  #allocation1 [shape = 'u32[144,128]{1,0:T(1,128)}', space=vmem, size = 0x12000, scoped, tag = 'internal scratch']
  %s0 = inlined_call_operand.hbm [shape: f32[16,128], index: 0, kind: input, shape index: {}]
  %s1 = inlined_call_operand.hbm [shape: f32[16,32], index: 1, kind: input, shape index: {}]
  %s2 = inlined_call_operand.hbm [shape: bf16[32,128], index: 2, kind: input, shape index: {}]
  %s3 = inlined_call_operand.vmem [shape: f32[1,128], index: 3, kind: input, shape index: {}]
  %s4 = inlined_call_operand.hbm [shape: bf16[128,256], index: 4, kind: input, shape index: {}]
  %s5 = inlined_call_operand.vmem [shape: f32[1,256], index: 5, kind: input, shape index: {}]
  %s6 = inlined_call_operand.hbm [shape: f32[16,128], index: 6, kind: output, shape index: {}]
  %s7 = sld [smem:[#allocation0]]
  $region50: #{tpu_custom_call.1} parent=0
    _
  %s9 = ssub.s32 1, %s7
  %s10 = scalar_select 0, %s9, %s7
  $region1: #{tpu_custom_call.1} parent=0
    #allocation2 [shape = 'u8[8192]{0}', space=vmem, size = 0x2000, scoped, tag = 'input window, operand 0, single buffered']
    #allocation3 [shape = 's32[1]{0}', space=sflag, size = 0x4, scoped, tag = 'scoped memory for tpu_custom_call.1']
    #allocation4 [shape = 's32[1]{0}', space=sflag, size = 0x4, scoped, tag = 'scoped memory for tpu_custom_call.1']
    #allocation5 [shape = 'u8[8192]{0}', space=vmem, size = 0x2000, scoped, tag = 'input window, operand 1, single buffered']
    #allocation6 [shape = 's32[1]{0}', space=sflag, size = 0x4, scoped, tag = 'scoped memory for tpu_custom_call.1']
    #allocation7 [shape = 'u8[8192]{0}', space=vmem, size = 0x2000, scoped, tag = 'input window, operand 2, single buffered']
    #allocation8 [shape = 'u8[65536]{0}', space=vmem, size = 0x10000, scoped, tag = 'input window, operand 4, single buffered']
    #allocation9 [shape = 's32[1]{0}', space=sflag, size = 0x4, scoped, tag = 'scoped memory for tpu_custom_call.1']
    #allocation10 [shape = 'u8[8192]{0}', space=vmem, size = 0x2000, scoped, tag = 'output window, operand 0, single buffered']
    %11 = vsyncpa [#allocation3], 0
    %12 = vsyncpa [#allocation6], 0
    %13 = vsyncpa [#allocation9], 0
    %14 = vsyncpa [#allocation4], 0
    // Predicated region
    $region2: #{tpu_custom_call.1} parent=1 // pred_check
      _
    $region3: #{tpu_custom_call.1} parent=1 // pred_check_branch
      %16 = sbr.rel (0) target = $region5
    $region4: #{tpu_custom_call.1} parent=1 // pred_region
      %s18 = ssub.s32 256, 256
      %19 = vsyncadd [#allocation3], %s18
      %s20 = sshll.u32 [#allocation2], 4
      %s21 = int_to_ptr.vmem [resolvable:$true] %s20
      %26 = dma.hbm_to_vmem [thread:$0]  %s0, 256, %s21, [#allocation3], 128, 128, 8
    $region5: #{tpu_custom_call.1} parent=1 // pred_fallthru
      _
    // Predicated region
    $region6: #{tpu_custom_call.1} parent=1 // pred_check
      _
    $region7: #{tpu_custom_call.1} parent=1 // pred_check_branch
      %28 = sbr.rel (0) target = $region9
    $region8: #{tpu_custom_call.1} parent=1 // pred_region
      %s30 = ssub.s32 256, 256
      %31 = vsyncadd [#allocation6], %s30
      %s32 = sshll.u32 [#allocation5], 4
      %s33 = int_to_ptr.vmem [resolvable:$true] %s32
      %38 = dma.hbm_to_vmem [thread:$0]  %s1, 256, %s33, [#allocation6], 128, 128, 8
    $region9: #{tpu_custom_call.1} parent=1 // pred_fallthru
      _
    // Predicated region
    $region10: #{tpu_custom_call.1} parent=1 // pred_check
      _
    $region11: #{tpu_custom_call.1} parent=1 // pred_check_branch
      %40 = sbr.rel (0) target = $region13
    $region12: #{tpu_custom_call.1} parent=1 // pred_region
      %s42 = ssub.s32 256, 256
      %43 = vsyncadd [#allocation6], %s42
      %s44 = sshll.u32 [#allocation7], 4
      %s45 = int_to_ptr.vmem [resolvable:$true] %s44
      %50 = dma.hbm_to_vmem [thread:$0]  %s2, 256, %s45, [#allocation6], 64, 64, 4
    $region13: #{tpu_custom_call.1} parent=1 // pred_fallthru
      _
    // Predicated region
    $region14: #{tpu_custom_call.1} parent=1 // pred_check
      _
    $region15: #{tpu_custom_call.1} parent=1 // pred_check_branch
      %52 = sbr.rel (0) target = $region17
    $region16: #{tpu_custom_call.1} parent=1 // pred_region
      _
    $region17: #{tpu_custom_call.1} parent=1 // pred_fallthru
      _
    // Predicated region
    $region18: #{tpu_custom_call.1} parent=1 // pred_check
      _
    $region19: #{tpu_custom_call.1} parent=1 // pred_check_branch
      %54 = sbr.rel (0) target = $region21
    $region20: #{tpu_custom_call.1} parent=1 // pred_region
      %s56 = ssub.s32 2048, 2048
      %57 = vsyncadd [#allocation9], %s56
      %s58 = sshll.u32 [#allocation8], 4
      %s59 = int_to_ptr.vmem [resolvable:$true] %s58
      %64 = dma.hbm_to_vmem [thread:$0]  %s4, 2048, %s59, [#allocation9], 128, 128, 8
    $region21: #{tpu_custom_call.1} parent=1 // pred_fallthru
      _
    // Predicated region
    $region22: #{tpu_custom_call.1} parent=1 // pred_check
      _
    $region23: #{tpu_custom_call.1} parent=1 // pred_check_branch
      %66 = sbr.rel (0) target = $region25
    $region24: #{tpu_custom_call.1} parent=1 // pred_region
      _
    $region25: #{tpu_custom_call.1} parent=1 // pred_fallthru
      _
    // Predicated region
    $region26: #{tpu_custom_call.1} parent=1 // pred_check
      _
    $region27: #{tpu_custom_call.1} parent=1 // pred_check_branch
      %68 = sbr.rel (0) target = $region29
    $region28: #{tpu_custom_call.1} parent=1 // pred_region
      %69 = dma.done [#allocation3], 256
    $region29: #{tpu_custom_call.1} parent=1 // pred_fallthru
      _
    // Predicated region
    $region30: #{tpu_custom_call.1} parent=1 // pred_check
      _
    $region31: #{tpu_custom_call.1} parent=1 // pred_check_branch
      %71 = sbr.rel (0) target = $region33
    $region32: #{tpu_custom_call.1} parent=1 // pred_region
      %72 = dma.done [#allocation6], 256
    $region33: #{tpu_custom_call.1} parent=1 // pred_fallthru
      _
    // Predicated region
    $region34: #{tpu_custom_call.1} parent=1 // pred_check
      _
    $region35: #{tpu_custom_call.1} parent=1 // pred_check_branch
      %74 = sbr.rel (0) target = $region37
    $region36: #{tpu_custom_call.1} parent=1 // pred_region
      %75 = dma.done [#allocation6], 256
    $region37: #{tpu_custom_call.1} parent=1 // pred_fallthru
      _
    // Predicated region
    $region38: #{tpu_custom_call.1} parent=1 // pred_check
      _
    $region39: #{tpu_custom_call.1} parent=1 // pred_check_branch
      %77 = sbr.rel (0) target = $region41
    $region40: #{tpu_custom_call.1} parent=1 // pred_region
      %78 = dma.done [#allocation9], 2048
    $region41: #{tpu_custom_call.1} parent=1 // pred_fallthru
      _
    %v80 = vld [vmem:[#allocation2] sm:$0xff]
    %v81 = vld [vmem:[#allocation2 + $0x8] sm:$0xff]
    %82 = vadd.xlane.f32.xlu0 %v80
    %v83 = vpop.xlane.xlu0 %82
    %84 = vadd.xlane.f32.xlu0 %v81
    %v85 = vpop.xlane.xlu0 %84
    %v86 = vrcp.pop 128.0
    %v87 = vmul.f32 %v83, %v86
    %v88 = vmul.f32 %v85, %v86
    %v89 = vsub.f32 %v80, %v87
    %v90 = vsub.f32 %v81, %v88
    %v91 = vmul.f32 %v89, %v89
    %v92 = vmul.f32 %v90, %v90
    %93 = vadd.xlane.f32.xlu0 %v91
    %v94 = vpop.xlane.xlu0 %93
    %95 = vadd.xlane.f32.xlu0 %v92
    %v96 = vpop.xlane.xlu0 %95
    %v97 = vmul.f32 %v94, %v86
    %v98 = vmul.f32 %v96, %v86
    %v99 = vadd.f32 %v97, 1e-05
    %v100 = vadd.f32 %v98, 1e-05
    %v101 = vrsqrt.pop %v99
    %v102 = vrsqrt.pop %v100
    %v103 = vmul.f32 %v89, %v101
    %v104 = vmul.f32 %v90, %v102
    %v105 = vld [vmem:[#allocation5] sm:$0xff]
    %v106 = vld [vmem:[#allocation5 + $0x8] sm:$0xff]
    %v107 = vpack.c.bf16 %v106, %v105
    %v108 = vld [vmem:[#allocation7] sm:$0xf]
    %v109 = vld [vmem:[#allocation7 + $0x4] sm:$0xf]
    %v110 = vld [vmem:[#allocation7 + $0x8] sm:$0xf]
    %v111 = vld [vmem:[#allocation7 + $0xc] sm:$0xf]
    %v112 = vld [vmem:[%s3] sm:$0x1]
    %v114 = vlaneseq
    %v115 = vshrl.u32 %v114, 7
    %v116 = vsub.s32 0, %v115
    %v117 = vrot.slane %v112, %v116
    %v123 = vunpack.c.l.b16 %v108
    %v124 = vunpack.c.l.b16 %v109
    %v125 = vunpack.c.l.b16 %v110
    %v126 = vunpack.c.l.b16 %v111
    %v127 = vpack.c.b16 %v124, %v123
    %v128 = vpack.c.b16 %v126, %v125
    %vm131 = vcmask 261120
    %v133 = vsel %vm131, %v107, 0
    %135 = vmatprep.subr.bf16.mxu0 0
    %136 = vmatpush1.bf16.msra.mxu0 %v127
    %137 = vmatprep.subr.bf16.mxu0 0
    %138 = vmatpush1.bf16.msra.mxu0 %v128
    %139 = vmatprep.subr.bf16.mxu0 0
    %140 = vmatpush1.bf16.msra.mxu0 0
    %141 = vmatprep.subr.bf16.mxu0 0
    %142 = vmatpush1.bf16.msra.mxu0 0
    %143 = vmatprep.subr.bf16.mxu0 0
    %144 = vmatpush1.bf16.msra.mxu0 0
    %145 = vmatprep.subr.bf16.mxu0 0
    %146 = vmatpush1.bf16.msra.mxu0 0
    %147 = vmatprep.subr.bf16.mxu0 0
    %148 = vmatpush1.bf16.msra.mxu0 0
    %149 = vmatprep.subr.bf16.mxu0 0
    %150 = vmatpush1.bf16.msra.mxu0 0
    %151 = vmatprep.subr.bf16.mxu0 0
    %152 = vmatpush1.bf16.msra.mxu0 0
    %153 = vmatprep.subr.bf16.mxu0 0
    %154 = vmatpush1.bf16.msra.mxu0 0
    %155 = vmatprep.subr.bf16.mxu0 0
    %156 = vmatpush1.bf16.msra.mxu0 0
    %157 = vmatprep.subr.bf16.mxu0 0
    %158 = vmatpush1.bf16.msra.mxu0 0
    %159 = vmatprep.subr.bf16.mxu0 0
    %160 = vmatpush1.bf16.msra.mxu0 0
    %161 = vmatprep.subr.bf16.mxu0 0
    %162 = vmatpush1.bf16.msra.mxu0 0
    %163 = vmatprep.subr.bf16.mxu0 0
    %164 = vmatpush1.bf16.msra.mxu0 0
    %165 = vmatprep.subr.bf16.mxu0 0
    %166 = vmatpush1.bf16.msra.mxu0 0
    %167 = vmatprep.mubr.bf16.mxu0 0
    %168 = vmatmul.mubr.bf16.gmra.mrb[0].mxu0 %v133
    %v169 = vpop.f32.mrb[0].mxu0
    %v170 = vadd.f32 %v117, %v169
    %v171 = vpop.f32.mrb[0].mxu0
    %v172 = vpop.f32.mrb[0].mxu0
    %v173 = vadd.f32 %v117, %v172
    %v174 = vpop.f32.mrb[0].mxu0
    %175 = vdwg.mxu0
    %v176 = vmax.f32 %v170, 0.0
    %v177 = vmax.f32 %v173, 0.0
    %v178 = vpack.c.bf16 %v177, %v176
    %v179 = vld [vmem:[#allocation8] sm:$0xff]
    %v180 = vld [vmem:[#allocation8 + $0x8] sm:$0xff]
    %v181 = vld [vmem:[#allocation8 + $0x10] sm:$0xff]
    %v182 = vld [vmem:[#allocation8 + $0x18] sm:$0xff]
    %v183 = vld [vmem:[#allocation8 + $0x20] sm:$0xff]
    %v184 = vld [vmem:[#allocation8 + $0x28] sm:$0xff]
    %v185 = vld [vmem:[#allocation8 + $0x30] sm:$0xff]
    %v186 = vld [vmem:[#allocation8 + $0x38] sm:$0xff]
    %v187 = vld [vmem:[#allocation8 + $0x40] sm:$0xff]
    %v188 = vld [vmem:[#allocation8 + $0x48] sm:$0xff]
    %v189 = vld [vmem:[#allocation8 + $0x50] sm:$0xff]
    %v190 = vld [vmem:[#allocation8 + $0x58] sm:$0xff]
    %v191 = vld [vmem:[#allocation8 + $0x60] sm:$0xff]
    %v192 = vld [vmem:[#allocation8 + $0x68] sm:$0xff]
    %v193 = vld [vmem:[#allocation8 + $0x70] sm:$0xff]
    %v194 = vld [vmem:[#allocation8 + $0x78] sm:$0xff]
    %v195 = vld [vmem:[%s5] sm:$0x3]
    %v197 = vlaneseq
    %v198 = vshrl.u32 %v197, 7
    %v199 = vsub.s32 0, %v198
    %v200 = vrot.slane %v195, %v199
    %v201 = vlaneseq
    %v202 = vshrl.u32 %v201, 7
    %v203 = vsub.s32 1, %v202
    %v204 = vrot.slane %v195, %v203
    %v223 = vunpack.c.l.b16 %v179
    %v224 = vunpack.c.h.b16 %v179
    %v225 = vunpack.c.l.b16 %v180
    %v226 = vunpack.c.h.b16 %v180
    %v227 = vunpack.c.l.b16 %v181
    %v228 = vunpack.c.h.b16 %v181
    %v229 = vunpack.c.l.b16 %v182
    %v230 = vunpack.c.h.b16 %v182
    %v231 = vunpack.c.l.b16 %v183
    %v232 = vunpack.c.h.b16 %v183
    %v233 = vunpack.c.l.b16 %v184
    %v234 = vunpack.c.h.b16 %v184
    %v235 = vunpack.c.l.b16 %v185
    %v236 = vunpack.c.h.b16 %v185
    %v237 = vunpack.c.l.b16 %v186
    %v238 = vunpack.c.h.b16 %v186
    %v239 = vunpack.c.l.b16 %v187
    %v240 = vunpack.c.h.b16 %v187
    %v241 = vunpack.c.l.b16 %v188
    %v242 = vunpack.c.h.b16 %v188
    %v243 = vunpack.c.l.b16 %v189
    %v244 = vunpack.c.h.b16 %v189
    %v245 = vunpack.c.l.b16 %v190
    %v246 = vunpack.c.h.b16 %v190
    %v247 = vunpack.c.l.b16 %v191
    %v248 = vunpack.c.h.b16 %v191
    %v249 = vunpack.c.l.b16 %v192
    %v250 = vunpack.c.h.b16 %v192
    %v251 = vunpack.c.l.b16 %v193
    %v252 = vunpack.c.h.b16 %v193
    %v253 = vunpack.c.l.b16 %v194
    %v254 = vunpack.c.h.b16 %v194
    %v255 = vpack.c.b16 %v225, %v223
    %v256 = vpack.c.b16 %v226, %v224
    %v257 = vpack.c.b16 %v229, %v227
    %v258 = vpack.c.b16 %v230, %v228
    %v259 = vpack.c.b16 %v233, %v231
    %v260 = vpack.c.b16 %v234, %v232
    %v261 = vpack.c.b16 %v237, %v235
    %v262 = vpack.c.b16 %v238, %v236
    %v263 = vpack.c.b16 %v241, %v239
    %v264 = vpack.c.b16 %v242, %v240
    %v265 = vpack.c.b16 %v245, %v243
    %v266 = vpack.c.b16 %v246, %v244
    %v267 = vpack.c.b16 %v249, %v247
    %v268 = vpack.c.b16 %v250, %v248
    %v269 = vpack.c.b16 %v253, %v251
    %v270 = vpack.c.b16 %v254, %v252
    %287 = vmatprep.subr.bf16.mxu0 %v256
    %288 = vmatpush1.bf16.msra.mxu0 %v255
    %289 = vmatprep.subr.bf16.mxu0 %v258
    %290 = vmatpush1.bf16.msra.mxu0 %v257
    %291 = vmatprep.subr.bf16.mxu0 %v260
    %292 = vmatpush1.bf16.msra.mxu0 %v259
    %293 = vmatprep.subr.bf16.mxu0 %v262
    %294 = vmatpush1.bf16.msra.mxu0 %v261
    %295 = vmatprep.subr.bf16.mxu0 %v264
    %296 = vmatpush1.bf16.msra.mxu0 %v263
    %297 = vmatprep.subr.bf16.mxu0 %v266
    %298 = vmatpush1.bf16.msra.mxu0 %v265
    %299 = vmatprep.subr.bf16.mxu0 %v268
    %300 = vmatpush1.bf16.msra.mxu0 %v267
    %301 = vmatprep.subr.bf16.mxu0 %v270
    %302 = vmatpush1.bf16.msra.mxu0 %v269
    %303 = vmatprep.subr.bf16.mxu0 0
    %304 = vmatpush1.bf16.msra.mxu0 0
    %305 = vmatprep.subr.bf16.mxu0 0
    %306 = vmatpush1.bf16.msra.mxu0 0
    %307 = vmatprep.subr.bf16.mxu0 0
    %308 = vmatpush1.bf16.msra.mxu0 0
    %309 = vmatprep.subr.bf16.mxu0 0
    %310 = vmatpush1.bf16.msra.mxu0 0
    %311 = vmatprep.subr.bf16.mxu0 0
    %312 = vmatpush1.bf16.msra.mxu0 0
    %313 = vmatprep.subr.bf16.mxu0 0
    %314 = vmatpush1.bf16.msra.mxu0 0
    %315 = vmatprep.subr.bf16.mxu0 0
    %316 = vmatpush1.bf16.msra.mxu0 0
    %317 = vmatprep.subr.bf16.mxu0 0
    %318 = vmatpush1.bf16.msra.mxu0 0
    %319 = vmatprep.mubr.bf16.mxu0 0
    %320 = vmatmul.mubr.bf16.gmra.mrb[0].mxu0 %v178
    %v321 = vpop.f32.mrb[0].mxu0
    %v322 = vadd.f32 %v200, %v321
    %v323 = vpop.f32.mrb[0].mxu0
    %v324 = vadd.f32 %v204, %v323
    %v325 = vpop.f32.mrb[0].mxu0
    %v326 = vadd.f32 %v200, %v325
    %v327 = vpop.f32.mrb[0].mxu0
    %v328 = vadd.f32 %v204, %v327
    %329 = vdwg.mxu0
    %v330 = vmul.f32 %v322, %v103
    %v331 = vmul.f32 %v326, %v104
    %v332 = vadd.f32 %v330, %v324
    %v333 = vadd.f32 %v331, %v328
    %334 = vst [vmem:[#allocation10] sm:$0xff] %v332
    %335 = vst [vmem:[#allocation10 + $0x8] sm:$0xff] %v333
    // Predicated region
    $region42: #{tpu_custom_call.1} parent=1 // pred_check
      _
    $region43: #{tpu_custom_call.1} parent=1 // pred_check_branch
      %337 = sbr.rel (0) target = $region45
    $region44: #{tpu_custom_call.1} parent=1 // pred_region
      %s339 = ssub.s32 256, 256
      %340 = vsyncadd [#allocation4], %s339
      %s341 = sshll.u32 [#allocation10], 4
      %s342 = int_to_ptr.vmem [resolvable:$true] %s341
      %347 = dma.vmem_to_hbm [thread:$0]  %s342, 256, %s6, [#allocation4], 128, 128, 8
    $region45: #{tpu_custom_call.1} parent=1 // pred_fallthru
      _
    // Predicated region
    $region46: #{tpu_custom_call.1} parent=1 // pred_check
      _
    $region47: #{tpu_custom_call.1} parent=1 // pred_check_branch
      %349 = sbr.rel (0) target = $region49
    $region48: #{tpu_custom_call.1} parent=1 // pred_region
      %350 = dma.done [#allocation4], 256
    $region49: #{tpu_custom_call.1} parent=1 // pred_fallthru
      _
    %351 = vsyncpa [#allocation3], 1
    %352 = vsyncpa [#allocation6], 1
    %353 = vsyncpa [#allocation9], 1
    %354 = vsyncpa [#allocation4], 1

</llo_original>
